<compile_context>
chip_gen: v6e
topology: v6e:2x2x1
jax: 0.10.0
libtpu: 0.0.40
codegen_flags: <defaults>
</compile_context>

<pallas_src>
import functools
import math

import jax
import jax.numpy as jnp
from jax import lax
from jax.experimental import pallas as pl
from jax.experimental.pallas import tpu as pltpu


def _round_up(x, m):
    return ((x + m - 1) // m) * m


def _largest_divisor_leq(n, cap):
    for d in range(min(n, cap), 0, -1):
        if n % d == 0:
            return d
    return 1


def _flash_attn_kernel(vl_ref, q_ref, k_ref, v_ref, o_ref,
                       m_sc, l_sc, acc_sc, *, scale, tk, compute_dtype):
    # vl_ref : (tq, 128) int32   valid-length threshold (identical along lanes)
    # q_ref  : (Bb, tq, D)       k_ref: (Bb, tk, D)     v_ref: (Bb, tk, Dvp)
    # o_ref  : (Bb, tq, Dvp)
    # m_sc/l_sc : (Bb, tq, 1) f32 scratch ; acc_sc : (Bb, tq, Dvp) f32 scratch
    ki = pl.program_id(2)

    @pl.when(ki == 0)
    def _init():
        m_sc[...] = jnp.full_like(m_sc, -jnp.inf)
        l_sc[...] = jnp.zeros_like(l_sc)
        acc_sc[...] = jnp.zeros_like(acc_sc)

    # Scale q (Bb*tq*D mults) instead of the (Bb,tq,tk) score tile; cast only matmul
    # inputs to the compute dtype, keep all softmax math in f32.
    q = (q_ref[...] * scale).astype(compute_dtype)
    k = k_ref[...].astype(compute_dtype)

    # scores: contract last dims directly ("NT" form -> MXU, no K transpose).
    s = lax.dot_general(q, k,
                        dimension_numbers=(((2,), (2,)), ((0,), (0,))),
                        preferred_element_type=jnp.float32)        # (Bb, tq, tk) f32

    # masked_fill(~(key_pos < valid_len), -inf); mask shared across batch.
    kpos = ki * tk + lax.broadcasted_iota(jnp.int32, s.shape, 2)
    vl = vl_ref[...][:, :1]                                        # (tq, 1)
    s = jnp.where(kpos < vl[None], s, -jnp.inf)

    # Online softmax update.
    m_prev = m_sc[...]
    m_new = jnp.maximum(m_prev, jnp.max(s, axis=-1, keepdims=True))
    alpha = jnp.exp(m_prev - m_new)
    p = jnp.exp(s - m_new)
    l_sc[...] = alpha * l_sc[...] + jnp.sum(p, axis=-1, keepdims=True)
    pv = lax.dot_general(p.astype(compute_dtype),
                         v_ref[...].astype(compute_dtype),
                         dimension_numbers=(((2,), (1,)), ((0,), (0,))),
                         preferred_element_type=jnp.float32)       # (Bb, tq, Dvp)
    acc_sc[...] = alpha * acc_sc[...] + pv
    m_sc[...] = m_new

    @pl.when(ki == pl.num_programs(2) - 1)
    def _finalize():
        inv_l = pl.reciprocal(l_sc[...], approx=True)              # EUP slot, ~free
        o_ref[...] = (acc_sc[...] * inv_l).astype(o_ref.dtype)


def dot_product_attention(q, k, v, valid_lens=None, *,
                          use_bf16_matmul=False, tq_max=256, tk_max=512):
    """Pallas equivalent of DotProductAttention.forward (eval mode)."""
    B, Tq, D = q.shape
    Bk, Tk, Dk = k.shape
    Bv, Tkv, Dv = v.shape
    assert B == Bk == Bv and Tk == Tkv and D == Dk

    out_dtype = q.dtype
    scale = 1.0 / math.sqrt(D)        # original (unpadded) feature dim

    # ---- tile sizes (multiples of 8 on the sublane axis; cap for v7x 64MiB VMEM) ----
    tq = min(tq_max, _round_up(Tq, 8))
    tk = min(tk_max, _round_up(Tk, 8))
    Tq_pad = _round_up(Tq, tq)
    Tk_pad = _round_up(Tk, tk)
    Dv_pad = _round_up(Dv, 128)       # lane-dense output stores

    # Batch-block several (small) problems per grid step to amortize step overhead.
    score_budget = 256 * 512          # f32 score elems per step (~512 KiB)
    bb_cap = max(1, score_budget // (tq * tk))
    Bb = _largest_divisor_leq(B, bb_cap)

    # ---- pad inputs (zeros); padded keys are masked out via the valid-length test ----
    qp = q if Tq_pad == Tq else jnp.pad(q, ((0, 0), (0, Tq_pad - Tq), (0, 0)))
    kp = k if Tk_pad == Tk else jnp.pad(k, ((0, 0), (0, Tk_pad - Tk), (0, 0)))
    vp = v
    if Tk_pad != Tk or Dv_pad != Dv:
        vp = jnp.pad(v, ((0, 0), (0, Tk_pad - Tk), (0, Dv_pad - Dv)))

    # valid-length column, shared across batch (module broadcasting: L in {1, Tq}).
    if valid_lens is None:
        vl = jnp.full((Tq,), Tk, dtype=jnp.int32)
    else:
        vl = jnp.asarray(valid_lens, jnp.int32).reshape(-1)
        if vl.shape[0] == 1:
            vl = jnp.broadcast_to(vl, (Tq,))
        assert vl.shape[0] == Tq, "module broadcasting requires len(valid_lens) in {1, Tq}"
    if Tq_pad != Tq:
        vl = jnp.concatenate([vl, jnp.full((Tq_pad - Tq,), Tk, jnp.int32)])
    vl2d = jnp.broadcast_to(vl[:, None], (Tq_pad, 128)).astype(jnp.int32)  # lane-dense

    if use_bf16_matmul and qp.dtype == jnp.float32:
        compute_dtype = jnp.bfloat16   # MXU inputs only; f32 accumulation & softmax
    else:
        compute_dtype = qp.dtype

    grid = (B // Bb, Tq_pad // tq, Tk_pad // tk)
    kernel = functools.partial(_flash_attn_kernel, scale=scale, tk=tk,
                               compute_dtype=compute_dtype)

    out = pl.pallas_call(
        kernel,
        out_shape=jax.ShapeDtypeStruct((B, Tq_pad, Dv_pad), out_dtype),
        grid_spec=pltpu.PrefetchScalarGridSpec(
            num_scalar_prefetch=0,
            grid=grid,
            in_specs=[
                pl.BlockSpec((tq, 128), lambda b, qi, ki: (qi, 0)),          # valid lens
                pl.BlockSpec((Bb, tq, D), lambda b, qi, ki: (b, qi, 0)),     # q
                pl.BlockSpec((Bb, tk, D), lambda b, qi, ki: (b, ki, 0)),     # k
                pl.BlockSpec((Bb, tk, Dv_pad), lambda b, qi, ki: (b, ki, 0)),# v
            ],
            out_specs=pl.BlockSpec((Bb, tq, Dv_pad), lambda b, qi, ki: (b, qi, 0)),
            scratch_shapes=[
                pltpu.VMEM((Bb, tq, 1), jnp.float32),       # m (running max)
                pltpu.VMEM((Bb, tq, 1), jnp.float32),       # l (running denom)
                pltpu.VMEM((Bb, tq, Dv_pad), jnp.float32),  # acc (unnormalized out)
            ],
        ),
        compiler_params=pltpu.CompilerParams(
            dimension_semantics=("parallel", "parallel", "arbitrary"),
            vmem_limit_bytes=32 * 1024 * 1024,
        ),
    )(vl2d, qp, kp, vp)

    return out[:, :Tq, :Dv]


def _reference(q, k, v, valid_lens):
    """Pure-JAX reference mirroring the PyTorch code."""
    s = jnp.einsum("bqd,bkd->bqk", q, k) / math.sqrt(q.shape[-1])
    if valid_lens is not None:
        Tk = s.shape[-1]
        mask = jnp.arange(Tk)[None, :] < jnp.asarray(valid_lens).reshape(-1, 1)  # (L, Tk)
        s = jnp.where(mask[None, :, :], s, -jnp.inf)
    p = jax.nn.softmax(s, axis=-1)
    return jnp.einsum("bqk,bkd->bqd", p, v)


if __name__ == "__main__":
    key = jax.random.PRNGKey(0)
    kq, kk, kv = jax.random.split(key, 3)

    B, Tq, Tk, D, Dv = 2, 8, 8, 32, 32
    q = jax.random.normal(kq, (B, Tq, D), dtype=jnp.float32)
    k = jax.random.normal(kk, (B, Tk, D), dtype=jnp.float32)
    v = jax.random.normal(kv, (B, Tk, Dv), dtype=jnp.float32)
    # valid_lens length == Tq (module's broadcasting rule), values in [1, Tk].
    valid_lens = jnp.array([3, 5, 8, 1, 2, 6, 4, 7], dtype=jnp.int32)

    out = jax.block_until_ready(dot_product_attention(q, k, v, valid_lens))
    ref = _reference(q, k, v, valid_lens)
    assert out.shape == (B, Tq, Dv)
    assert jnp.allclose(out, ref, atol=5e-3, rtol=5e-3), "mismatch vs reference (masked)"

    # valid_lens=None path.
    out2 = jax.block_until_ready(dot_product_attention(q, k, v, None))
    ref2 = _reference(q, k, v, None)
    assert jnp.allclose(out2, ref2, atol=5e-3, rtol=5e-3), "mismatch vs reference (no mask)"

    # bf16 MXU-input fast path (v6e/v7x); bf16-aware tolerance.
    out3 = jax.block_until_ready(
        dot_product_attention(q, k, v, valid_lens, use_bf16_matmul=True))
    assert jnp.allclose(out3, ref, atol=5e-2, rtol=5e-2), "mismatch vs reference (bf16)"

    print("KERNEL_OK")
</pallas_src>

<mosaic_0001>
module attributes {stable_mosaic.version = 11 : i64} {
  func.func @_flash_attn_kernel(%arg0: i32, %arg1: i32, %arg2: i32, %arg3: memref<8x128xi32, #tpu.memory_space<vmem>>, %arg4: memref<2x8x32xf32, #tpu.memory_space<vmem>>, %arg5: memref<2x8x32xf32, #tpu.memory_space<vmem>>, %arg6: memref<2x8x128xf32, #tpu.memory_space<vmem>>, %arg7: memref<2x8x128xf32, #tpu.memory_space<vmem>>, %arg8: memref<2x8x1xf32, #tpu.memory_space<vmem>>, %arg9: memref<2x8x1xf32, #tpu.memory_space<vmem>>, %arg10: memref<2x8x128xf32, #tpu.memory_space<vmem>>) attributes {dimension_semantics = [#tpu.dimension_semantics<parallel>, #tpu.dimension_semantics<parallel>, #tpu.dimension_semantics<arbitrary>], iteration_bounds = array<i64: 1, 1, 1>, scalar_prefetch = 0 : i64, scratch_operands = 3 : i64, tpu.core_type = #tpu.core_type<tc>, window_params = [{transform_indices = @transform_0, window_bounds = array<i64: 8, 128>}, {transform_indices = @transform_1, window_bounds = array<i64: 2, 8, 32>}, {transform_indices = @transform_2, window_bounds = array<i64: 2, 8, 32>}, {transform_indices = @transform_3, window_bounds = array<i64: 2, 8, 128>}, {transform_indices = @transform_4, window_bounds = array<i64: 2, 8, 128>}]} {
    %c0_i32 = arith.constant 0 : i32
    %0 = arith.cmpi eq, %arg2, %c0_i32 : i32
    %1 = arith.extui %0 : i1 to i32
    %c0_i32_0 = arith.constant 0 : i32
    %2 = arith.cmpi ne, %1, %c0_i32_0 : i32
    scf.if %2 {
      %cst_36 = arith.constant 0xFF800000 : f32
      %45 = vector.broadcast %cst_36 : f32 to vector<2x8x1xf32>
      %c0_37 = arith.constant 0 : index
      %c0_38 = arith.constant 0 : index
      %c0_39 = arith.constant 0 : index
      %46 = vector.load %arg8[%c0_37, %c0_38, %c0_39] : memref<2x8x1xf32, #tpu.memory_space<vmem>>, vector<2x8x1xf32>
      tpu.vector_store %arg8[%c0_37, %c0_38, %c0_39], %45 {strides = array<i32>} : memref<2x8x1xf32, #tpu.memory_space<vmem>>, vector<2x8x1xf32>,
      %cst_40 = arith.constant 0.000000e+00 : f32
      %47 = vector.broadcast %cst_40 : f32 to vector<2x8x1xf32>
      %c0_41 = arith.constant 0 : index
      %c0_42 = arith.constant 0 : index
      %c0_43 = arith.constant 0 : index
      %48 = vector.load %arg9[%c0_41, %c0_42, %c0_43] : memref<2x8x1xf32, #tpu.memory_space<vmem>>, vector<2x8x1xf32>
      tpu.vector_store %arg9[%c0_41, %c0_42, %c0_43], %47 {strides = array<i32>} : memref<2x8x1xf32, #tpu.memory_space<vmem>>, vector<2x8x1xf32>,
      %cst_44 = arith.constant 0.000000e+00 : f32
      %49 = vector.broadcast %cst_44 : f32 to vector<2x8x128xf32>
      %c0_45 = arith.constant 0 : index
      %c0_46 = arith.constant 0 : index
      %c0_47 = arith.constant 0 : index
      %50 = vector.load %arg10[%c0_45, %c0_46, %c0_47] : memref<2x8x128xf32, #tpu.memory_space<vmem>>, vector<2x8x128xf32>
      tpu.vector_store %arg10[%c0_45, %c0_46, %c0_47], %49 {strides = array<i32>} : memref<2x8x128xf32, #tpu.memory_space<vmem>>, vector<2x8x128xf32>,
    } else {
    }
    %c0 = arith.constant 0 : index
    %c0_1 = arith.constant 0 : index
    %c0_2 = arith.constant 0 : index
    %3 = vector.load %arg4[%c0, %c0_1, %c0_2] : memref<2x8x32xf32, #tpu.memory_space<vmem>>, vector<2x8x32xf32>
    %cst = arith.constant 0.176776692 : f32
    %4 = vector.broadcast %cst : f32 to vector<2x8x32xf32>
    %5 = arith.mulf %3, %4 : vector<2x8x32xf32>
    %c0_3 = arith.constant 0 : index
    %c0_4 = arith.constant 0 : index
    %c0_5 = arith.constant 0 : index
    %6 = vector.load %arg5[%c0_3, %c0_4, %c0_5] : memref<2x8x32xf32, #tpu.memory_space<vmem>>, vector<2x8x32xf32>
    %cst_6 = arith.constant dense<0.000000e+00> : vector<2x8x8xf32>
    %7 = tpu.matmul %5, %6, %cst_6 {dimension_numbers = #tpu.dot_dimension_numbers<[2], [2], [1], [1], [0, 0, 0, 1, 1, 1], [0], [0]>} : vector<2x8x32xf32>, vector<2x8x32xf32>, vector<2x8x8xf32> -> vector<2x8x8xf32>
    %c8_i32 = arith.constant 8 : i32
    %8 = arith.muli %arg2, %c8_i32 : i32
    %9 = tpu.iota {dimensions = array<i32: 2>} : vector<2x8x8xi32>
    %10 = vector.broadcast %8 : i32 to vector<2x8x8xi32>
    %11 = arith.addi %10, %9 : vector<2x8x8xi32>
    %c0_7 = arith.constant 0 : index
    %c0_8 = arith.constant 0 : index
    %12 = vector.load %arg3[%c0_7, %c0_8] : memref<8x128xi32, #tpu.memory_space<vmem>>, vector<8x128xi32>
    %13 = vector.extract_strided_slice %12 {offsets = [0, 0], sizes = [8, 1], strides = [1, 1]} : vector<8x128xi32> to vector<8x1xi32>
    %14 = vector.shape_cast %13 : vector<8x1xi32> to vector<1x8x1xi32>
    %15 = vector.broadcast %14 : vector<1x8x1xi32> to vector<2x8x8xi32>
    %16 = arith.cmpi slt, %11, %15 : vector<2x8x8xi32>
    %cst_9 = arith.constant 0xFF800000 : f32
    %17 = vector.broadcast %cst_9 : f32 to vector<2x8x8xf32>
    %18 = arith.select %16, %7, %17 : vector<2x8x8xi1>, vector<2x8x8xf32>
    %c0_10 = arith.constant 0 : index
    %c0_11 = arith.constant 0 : index
    %c0_12 = arith.constant 0 : index
    %19 = vector.load %arg8[%c0_10, %c0_11, %c0_12] : memref<2x8x1xf32, #tpu.memory_space<vmem>>, vector<2x8x1xf32>
    %cst_13 = arith.constant dense<0xFF800000> : vector<2x8xf32>
    %20 = vector.multi_reduction <maximumf>, %18, %cst_13 [2] : vector<2x8x8xf32> to vector<2x8xf32>
    %21 = vector.shape_cast %20 : vector<2x8xf32> to vector<2x8x1xf32>
    %22 = arith.maximumf %19, %21 : vector<2x8x1xf32>
    %23 = arith.subf %19, %22 : vector<2x8x1xf32>
    %24 = math.exp %23 : vector<2x8x1xf32>
    %25 = vector.broadcast %22 : vector<2x8x1xf32> to vector<2x8x8xf32>
    %26 = arith.subf %18, %25 : vector<2x8x8xf32>
    %27 = math.exp %26 : vector<2x8x8xf32>
    %c0_14 = arith.constant 0 : index
    %c0_15 = arith.constant 0 : index
    %c0_16 = arith.constant 0 : index
    %28 = vector.load %arg9[%c0_14, %c0_15, %c0_16] : memref<2x8x1xf32, #tpu.memory_space<vmem>>, vector<2x8x1xf32>
    %29 = arith.mulf %24, %28 : vector<2x8x1xf32>
    %cst_17 = arith.constant dense<0.000000e+00> : vector<2x8xf32>
    %30 = vector.multi_reduction <add>, %27, %cst_17 [2] : vector<2x8x8xf32> to vector<2x8xf32>
    %31 = vector.shape_cast %30 : vector<2x8xf32> to vector<2x8x1xf32>
    %32 = arith.addf %29, %31 : vector<2x8x1xf32>
    %c0_18 = arith.constant 0 : index
    %c0_19 = arith.constant 0 : index
    %c0_20 = arith.constant 0 : index
    %33 = vector.load %arg9[%c0_18, %c0_19, %c0_20] : memref<2x8x1xf32, #tpu.memory_space<vmem>>, vector<2x8x1xf32>
    tpu.vector_store %arg9[%c0_18, %c0_19, %c0_20], %32 {strides = array<i32>} : memref<2x8x1xf32, #tpu.memory_space<vmem>>, vector<2x8x1xf32>,
    %c0_21 = arith.constant 0 : index
    %c0_22 = arith.constant 0 : index
    %c0_23 = arith.constant 0 : index
    %34 = vector.load %arg6[%c0_21, %c0_22, %c0_23] : memref<2x8x128xf32, #tpu.memory_space<vmem>>, vector<2x8x128xf32>
    %cst_24 = arith.constant dense<0.000000e+00> : vector<2x8x128xf32>
    %35 = tpu.matmul %27, %34, %cst_24 {dimension_numbers = #tpu.dot_dimension_numbers<[2], [1], [1], [2], [0, 0, 0, 1, 1, 2], [0], [0]>} : vector<2x8x8xf32>, vector<2x8x128xf32>, vector<2x8x128xf32> -> vector<2x8x128xf32>
    %c0_25 = arith.constant 0 : index
    %c0_26 = arith.constant 0 : index
    %c0_27 = arith.constant 0 : index
    %36 = vector.load %arg10[%c0_25, %c0_26, %c0_27] : memref<2x8x128xf32, #tpu.memory_space<vmem>>, vector<2x8x128xf32>
    %37 = vector.broadcast %24 : vector<2x8x1xf32> to vector<2x8x128xf32>
    %38 = arith.mulf %37, %36 : vector<2x8x128xf32>
    %39 = arith.addf %38, %35 : vector<2x8x128xf32>
    %c0_28 = arith.constant 0 : index
    %c0_29 = arith.constant 0 : index
    %c0_30 = arith.constant 0 : index
    %40 = vector.load %arg10[%c0_28, %c0_29, %c0_30] : memref<2x8x128xf32, #tpu.memory_space<vmem>>, vector<2x8x128xf32>
    tpu.vector_store %arg10[%c0_28, %c0_29, %c0_30], %39 {strides = array<i32>} : memref<2x8x128xf32, #tpu.memory_space<vmem>>, vector<2x8x128xf32>,
    %c0_31 = arith.constant 0 : index
    %c0_32 = arith.constant 0 : index
    %c0_33 = arith.constant 0 : index
    %41 = vector.load %arg8[%c0_31, %c0_32, %c0_33] : memref<2x8x1xf32, #tpu.memory_space<vmem>>, vector<2x8x1xf32>
    tpu.vector_store %arg8[%c0_31, %c0_32, %c0_33], %22 {strides = array<i32>} : memref<2x8x1xf32, #tpu.memory_space<vmem>>, vector<2x8x1xf32>,
    %c0_i32_34 = arith.constant 0 : i32
    %42 = arith.cmpi eq, %arg2, %c0_i32_34 : i32
    %43 = arith.extui %42 : i1 to i32
    %c0_i32_35 = arith.constant 0 : i32
    %44 = arith.cmpi ne, %43, %c0_i32_35 : i32
    scf.if %44 {
      %c0_36 = arith.constant 0 : index
      %c0_37 = arith.constant 0 : index
      %c0_38 = arith.constant 0 : index
      %45 = vector.load %arg9[%c0_36, %c0_37, %c0_38] : memref<2x8x1xf32, #tpu.memory_space<vmem>>, vector<2x8x1xf32>
      %46 = tpu.reciprocal %45 {approx = true} : vector<2x8x1xf32> -> vector<2x8x1xf32>
      %c0_39 = arith.constant 0 : index
      %c0_40 = arith.constant 0 : index
      %c0_41 = arith.constant 0 : index
      %47 = vector.load %arg10[%c0_39, %c0_40, %c0_41] : memref<2x8x128xf32, #tpu.memory_space<vmem>>, vector<2x8x128xf32>
      %48 = vector.broadcast %46 : vector<2x8x1xf32> to vector<2x8x128xf32>
      %49 = arith.mulf %47, %48 : vector<2x8x128xf32>
      %c0_42 = arith.constant 0 : index
      %c0_43 = arith.constant 0 : index
      %c0_44 = arith.constant 0 : index
      %50 = vector.load %arg7[%c0_42, %c0_43, %c0_44] : memref<2x8x128xf32, #tpu.memory_space<vmem>>, vector<2x8x128xf32>
      tpu.vector_store %arg7[%c0_42, %c0_43, %c0_44], %49 {strides = array<i32>} : memref<2x8x128xf32, #tpu.memory_space<vmem>>, vector<2x8x128xf32>,
    } else {
    }
    return
  }
  func.func @transform_0(%arg0: i32, %arg1: i32, %arg2: i32) -> (i32, i32) {
    %c0_i32 = arith.constant 0 : i32
    %c0_i32_0 = arith.constant 0 : i32
    return %arg1, %c0_i32 : i32, i32
  }
  func.func @transform_1(%arg0: i32, %arg1: i32, %arg2: i32) -> (i32, i32, i32) {
    %c0_i32 = arith.constant 0 : i32
    %c0_i32_0 = arith.constant 0 : i32
    return %arg0, %arg1, %c0_i32 : i32, i32, i32
  }
  func.func @transform_2(%arg0: i32, %arg1: i32, %arg2: i32) -> (i32, i32, i32) {
    %c0_i32 = arith.constant 0 : i32
    %c0_i32_0 = arith.constant 0 : i32
    return %arg0, %arg2, %c0_i32 : i32, i32, i32
  }
  func.func @transform_3(%arg0: i32, %arg1: i32, %arg2: i32) -> (i32, i32, i32) {
    %c0_i32 = arith.constant 0 : i32
    %c0_i32_0 = arith.constant 0 : i32
    return %arg0, %arg2, %c0_i32 : i32, i32, i32
  }
  func.func @transform_4(%arg0: i32, %arg1: i32, %arg2: i32) -> (i32, i32, i32) {
    %c0_i32 = arith.constant 0 : i32
    %c0_i32_0 = arith.constant 0 : i32
    return %arg0, %arg1, %c0_i32 : i32, i32, i32
  }
}

</mosaic_0001>

<llo_original>
// kernel: tpu_custom_call.1
$region0: #{tpu_custom_call.1}
  #allocation0 [shape = 'u32[]', space=smem, size = 0x4, offset = 0x4, fixed_abs, tag = 'smem constant byte address 0x4 - core index']
  #allocation1 [shape = 'u32[144,128]{1,0:T(1,128)}', space=vmem, size = 0x12000, scoped, tag = 'internal scratch']
  #allocation2 [shape = 'f32[2,8,1]{2,1,0:T(8,128)}', space=vmem, size = 0x2000, scoped, tag = 'scratch operand']
  #allocation3 [shape = 'f32[2,8,1]{2,1,0:T(8,128)}', space=vmem, size = 0x2000, scoped, tag = 'scratch operand']
  #allocation4 [shape = 'f32[2,8,128]{2,1,0:T(8,128)}', space=vmem, size = 0x2000, scoped, tag = 'scratch operand']
  %s0 = inlined_call_operand.hbm [shape: s32[8,128], index: 0, kind: input, shape index: {}]
  %s1 = inlined_call_operand.hbm [shape: f32[2,8,32], index: 1, kind: input, shape index: {}]
  %s2 = inlined_call_operand.hbm [shape: f32[2,8,32], index: 2, kind: input, shape index: {}]
  %s3 = inlined_call_operand.hbm [shape: f32[2,8,128], index: 3, kind: input, shape index: {}]
  %s4 = inlined_call_operand.hbm [shape: f32[2,8,128], index: 4, kind: output, shape index: {}]
  %s5 = sld [smem:[#allocation0]]
  $region50: #{tpu_custom_call.1} parent=0
    _
  %s7 = ssub.s32 1, %s5
  %s8 = scalar_select 0, %s7, %s5
  $region1: #{tpu_custom_call.1} parent=0
    #allocation5 [shape = 'u8[4096]{0}', space=vmem, size = 0x1000, scoped, tag = 'input window, operand 0, single buffered']
    #allocation6 [shape = 's32[1]{0}', space=sflag, size = 0x4, scoped, tag = 'scoped memory for tpu_custom_call.1']
    #allocation7 [shape = 's32[1]{0}', space=sflag, size = 0x4, scoped, tag = 'scoped memory for tpu_custom_call.1']
    #allocation8 [shape = 'u8[8192]{0}', space=vmem, size = 0x2000, scoped, tag = 'input window, operand 1, single buffered']
    #allocation9 [shape = 's32[1]{0}', space=sflag, size = 0x4, scoped, tag = 'scoped memory for tpu_custom_call.1']
    #allocation10 [shape = 'u8[8192]{0}', space=vmem, size = 0x2000, scoped, tag = 'input window, operand 2, single buffered']
    #allocation11 [shape = 'u8[8192]{0}', space=vmem, size = 0x2000, scoped, tag = 'input window, operand 3, single buffered']
    #allocation12 [shape = 's32[1]{0}', space=sflag, size = 0x4, scoped, tag = 'scoped memory for tpu_custom_call.1']
    #allocation13 [shape = 'u8[8192]{0}', space=vmem, size = 0x2000, scoped, tag = 'output window, operand 0, single buffered']
    %9 = vsyncpa [#allocation6], 0
    %10 = vsyncpa [#allocation9], 0
    %11 = vsyncpa [#allocation12], 0
    %12 = vsyncpa [#allocation7], 0
    // Predicated region
    $region2: #{tpu_custom_call.1} parent=1 // pred_check
      _
    $region3: #{tpu_custom_call.1} parent=1 // pred_check_branch
      %14 = sbr.rel (0) target = $region5
    $region4: #{tpu_custom_call.1} parent=1 // pred_region
      %s16 = ssub.s32 128, 128
      %17 = vsyncadd [#allocation6], %s16
      %s19 = sshll.u32 [#allocation5], 4
      %s20 = int_to_ptr.vmem [resolvable:$true] %s19
      %22 = dma.hbm_to_vmem [thread:$0]  %s0, 128, %s20, [#allocation6]
    $region5: #{tpu_custom_call.1} parent=1 // pred_fallthru
      _
    // Predicated region
    $region6: #{tpu_custom_call.1} parent=1 // pred_check
      _
    $region7: #{tpu_custom_call.1} parent=1 // pred_check_branch
      %24 = sbr.rel (0) target = $region9
    $region8: #{tpu_custom_call.1} parent=1 // pred_region
      %s26 = ssub.s32 256, 256
      %27 = vsyncadd [#allocation9], %s26
      %s28 = sshll.u32 [#allocation8], 4
      %s29 = int_to_ptr.vmem [resolvable:$true] %s28
      %34 = dma.hbm_to_vmem [thread:$0]  %s1, 256, %s29, [#allocation9], 128, 128, 8
    $region9: #{tpu_custom_call.1} parent=1 // pred_fallthru
      _
    // Predicated region
    $region10: #{tpu_custom_call.1} parent=1 // pred_check
      _
    $region11: #{tpu_custom_call.1} parent=1 // pred_check_branch
      %36 = sbr.rel (0) target = $region13
    $region12: #{tpu_custom_call.1} parent=1 // pred_region
      %s38 = ssub.s32 256, 256
      %39 = vsyncadd [#allocation9], %s38
      %s40 = sshll.u32 [#allocation10], 4
      %s41 = int_to_ptr.vmem [resolvable:$true] %s40
      %46 = dma.hbm_to_vmem [thread:$0]  %s2, 256, %s41, [#allocation9], 128, 128, 8
    $region13: #{tpu_custom_call.1} parent=1 // pred_fallthru
      _
    // Predicated region
    $region14: #{tpu_custom_call.1} parent=1 // pred_check
      _
    $region15: #{tpu_custom_call.1} parent=1 // pred_check_branch
      %48 = sbr.rel (0) target = $region17
    $region16: #{tpu_custom_call.1} parent=1 // pred_region
      %s50 = ssub.s32 256, 256
      %51 = vsyncadd [#allocation12], %s50
      %s52 = sshll.u32 [#allocation11], 4
      %s53 = int_to_ptr.vmem [resolvable:$true] %s52
      %58 = dma.hbm_to_vmem [thread:$0]  %s3, 256, %s53, [#allocation12], 128, 128, 8
    $region17: #{tpu_custom_call.1} parent=1 // pred_fallthru
      _
    // Predicated region
    $region18: #{tpu_custom_call.1} parent=1 // pred_check
      _
    $region19: #{tpu_custom_call.1} parent=1 // pred_check_branch
      %60 = sbr.rel (0) target = $region21
    $region20: #{tpu_custom_call.1} parent=1 // pred_region
      %61 = dma.done [#allocation6], 128
    $region21: #{tpu_custom_call.1} parent=1 // pred_fallthru
      _
    // Predicated region
    $region22: #{tpu_custom_call.1} parent=1 // pred_check
      _
    $region23: #{tpu_custom_call.1} parent=1 // pred_check_branch
      %63 = sbr.rel (0) target = $region25
    $region24: #{tpu_custom_call.1} parent=1 // pred_region
      %64 = dma.done [#allocation9], 256
    $region25: #{tpu_custom_call.1} parent=1 // pred_fallthru
      _
    // Predicated region
    $region26: #{tpu_custom_call.1} parent=1 // pred_check
      _
    $region27: #{tpu_custom_call.1} parent=1 // pred_check_branch
      %66 = sbr.rel (0) target = $region29
    $region28: #{tpu_custom_call.1} parent=1 // pred_region
      %67 = dma.done [#allocation9], 256
    $region29: #{tpu_custom_call.1} parent=1 // pred_fallthru
      _
    // Predicated region
    $region30: #{tpu_custom_call.1} parent=1 // pred_check
      _
    $region31: #{tpu_custom_call.1} parent=1 // pred_check_branch
      %69 = sbr.rel (0) target = $region33
    $region32: #{tpu_custom_call.1} parent=1 // pred_region
      %70 = dma.done [#allocation12], 256
    $region33: #{tpu_custom_call.1} parent=1 // pred_fallthru
      _
    %p71 = scmp.eq.s32.totalorder 0, 0
    // Predicated region
    $region34: #{tpu_custom_call.1} parent=1 // pred_check
      %p72 = pneg %p71
    $region35: #{tpu_custom_call.1} parent=1 // pred_check_branch
      %74 = sbr.rel (%p72) target = $region37
    $region36: #{tpu_custom_call.1} parent=1 // pred_region
      %vm75 = vcmask 7168
      %76 = vst.msk [vmem:[#allocation2] sm:$0xff] %vm75, -inf
      %77 = vst.msk [vmem:[#allocation2 + $0x8] sm:$0xff] %vm75, -inf
      %78 = vst.msk [vmem:[#allocation3] sm:$0xff] %vm75, 0.0
      %79 = vst.msk [vmem:[#allocation3 + $0x8] sm:$0xff] %vm75, 0.0
      %80 = vst [vmem:[#allocation4] sm:$0xff] 0.0
      %81 = vst [vmem:[#allocation4 + $0x8] sm:$0xff] 0.0
    $region37: #{tpu_custom_call.1} parent=1 // pred_fallthru
      _
    %v82 = vld [vmem:[#allocation8] sm:$0xff]
    %v83 = vld [vmem:[#allocation8 + $0x8] sm:$0xff]
    %v84 = vmul.f32 %v82, 0.17677669
    %v85 = vmul.f32 %v83, 0.17677669
    %v86 = vld [vmem:[#allocation10] sm:$0xff]
    %v87 = vld [vmem:[#allocation10 + $0x8] sm:$0xff]
    %vm88 = vcmask 261120
    %v90 = vsel %vm88, %v84, 0
    %v93 = vsel %vm88, %v86, 0
    %95 = vmatprep.subr.mxu0 0.0
    %96 = vmatpush1.xpose.msra.mxu0 0.0
    %97 = vmatprep.subr.mxu0 0.0
    %98 = vmatpush1.xpose.msra.mxu0 0.0
    %99 = vmatprep.subr.mxu0 0.0
    %100 = vmatpush1.xpose.msra.mxu0 0.0
    %101 = vmatprep.subr.mxu0 0.0
    %102 = vmatpush1.xpose.msra.mxu0 0.0
    %103 = vmatprep.subr.mxu0 0.0
    %104 = vmatpush1.xpose.msra.mxu0 0.0
    %105 = vmatprep.subr.mxu0 0.0
    %106 = vmatpush1.xpose.msra.mxu0 0.0
    %107 = vmatprep.subr.mxu0 0.0
    %108 = vmatpush1.xpose.msra.mxu0 0.0
    %109 = vmatprep.subr.mxu0 0.0
    %110 = vmatpush1.xpose.msra.mxu0 0.0
    %111 = vmatprep.subr.mxu0 0.0
    %112 = vmatpush1.xpose.msra.mxu0 0.0
    %113 = vmatprep.subr.mxu0 0.0
    %114 = vmatpush1.xpose.msra.mxu0 0.0
    %115 = vmatprep.subr.mxu0 0.0
    %116 = vmatpush1.xpose.msra.mxu0 0.0
    %117 = vmatprep.subr.mxu0 0.0
    %118 = vmatpush1.xpose.msra.mxu0 0.0
    %119 = vmatprep.subr.mxu0 0.0
    %120 = vmatpush1.xpose.msra.mxu0 0.0
    %121 = vmatprep.subr.mxu0 0.0
    %122 = vmatpush1.xpose.msra.mxu0 0.0
    %123 = vmatprep.subr.mxu0 0.0
    %124 = vmatpush1.xpose.msra.mxu0 0.0
    %125 = vmatprep.subr.mxu0 0.0
    %126 = vmatpush1.xpose.msra.mxu0 %v93
    %127 = vmatprep.subr.mxu0 0.0
    %128 = vmatpush2.xpose.msra.mxu0 0.0
    %129 = vmatprep.subr.mxu0 0.0
    %130 = vmatpush2.xpose.msra.mxu0 0.0
    %131 = vmatprep.subr.mxu0 0.0
    %132 = vmatpush2.xpose.msra.mxu0 0.0
    %133 = vmatprep.subr.mxu0 0.0
    %134 = vmatpush2.xpose.msra.mxu0 0.0
    %135 = vmatprep.subr.mxu0 0.0
    %136 = vmatpush2.xpose.msra.mxu0 0.0
    %137 = vmatprep.subr.mxu0 0.0
    %138 = vmatpush2.xpose.msra.mxu0 0.0
    %139 = vmatprep.subr.mxu0 0.0
    %140 = vmatpush2.xpose.msra.mxu0 0.0
    %141 = vmatprep.subr.mxu0 0.0
    %142 = vmatpush2.xpose.msra.mxu0 0.0
    %143 = vmatprep.subr.mxu0 0.0
    %144 = vmatpush2.xpose.msra.mxu0 0.0
    %145 = vmatprep.subr.mxu0 0.0
    %146 = vmatpush2.xpose.msra.mxu0 0.0
    %147 = vmatprep.subr.mxu0 0.0
    %148 = vmatpush2.xpose.msra.mxu0 0.0
    %149 = vmatprep.subr.mxu0 0.0
    %150 = vmatpush2.xpose.msra.mxu0 0.0
    %151 = vmatprep.subr.mxu0 0.0
    %152 = vmatpush2.xpose.msra.mxu0 0.0
    %153 = vmatprep.subr.mxu0 0.0
    %154 = vmatpush2.xpose.msra.mxu0 0.0
    %155 = vmatprep.subr.mxu0 0.0
    %156 = vmatpush2.xpose.msra.mxu0 0.0
    %157 = vmatprep.subr.mxu0 0.0
    %158 = vmatpush2.xpose.msra.mxu0 0.0
    %159 = vmatprep.mubr.f32.mxu0 0.0
    %160 = vmatmul.mubr.f32.gmra.mxu0 %v90
    %v161 = vpop.f32.mrf.mxu0
    %v162 = vadd.f32 0.0, %v161
    %v163 = vpop.f32.mrf.mxu0
    %164 = vdwg.mxu0
    %v166 = vsel %vm88, %v85, 0
    %v169 = vsel %vm88, %v87, 0
    %171 = vmatprep.subr.mxu0 0.0
    %172 = vmatpush1.xpose.msra.mxu0 0.0
    %173 = vmatprep.subr.mxu0 0.0
    %174 = vmatpush1.xpose.msra.mxu0 0.0
    %175 = vmatprep.subr.mxu0 0.0
    %176 = vmatpush1.xpose.msra.mxu0 0.0
    %177 = vmatprep.subr.mxu0 0.0
    %178 = vmatpush1.xpose.msra.mxu0 0.0
    %179 = vmatprep.subr.mxu0 0.0
    %180 = vmatpush1.xpose.msra.mxu0 0.0
    %181 = vmatprep.subr.mxu0 0.0
    %182 = vmatpush1.xpose.msra.mxu0 0.0
    %183 = vmatprep.subr.mxu0 0.0
    %184 = vmatpush1.xpose.msra.mxu0 0.0
    %185 = vmatprep.subr.mxu0 0.0
    %186 = vmatpush1.xpose.msra.mxu0 0.0
    %187 = vmatprep.subr.mxu0 0.0
    %188 = vmatpush1.xpose.msra.mxu0 0.0
    %189 = vmatprep.subr.mxu0 0.0
    %190 = vmatpush1.xpose.msra.mxu0 0.0
    %191 = vmatprep.subr.mxu0 0.0
    %192 = vmatpush1.xpose.msra.mxu0 0.0
    %193 = vmatprep.subr.mxu0 0.0
    %194 = vmatpush1.xpose.msra.mxu0 0.0
    %195 = vmatprep.subr.mxu0 0.0
    %196 = vmatpush1.xpose.msra.mxu0 0.0
    %197 = vmatprep.subr.mxu0 0.0
    %198 = vmatpush1.xpose.msra.mxu0 0.0
    %199 = vmatprep.subr.mxu0 0.0
    %200 = vmatpush1.xpose.msra.mxu0 0.0
    %201 = vmatprep.subr.mxu0 0.0
    %202 = vmatpush1.xpose.msra.mxu0 %v169
    %203 = vmatprep.subr.mxu0 0.0
    %204 = vmatpush2.xpose.msra.mxu0 0.0
    %205 = vmatprep.subr.mxu0 0.0
    %206 = vmatpush2.xpose.msra.mxu0 0.0
    %207 = vmatprep.subr.mxu0 0.0
    %208 = vmatpush2.xpose.msra.mxu0 0.0
    %209 = vmatprep.subr.mxu0 0.0
    %210 = vmatpush2.xpose.msra.mxu0 0.0
    %211 = vmatprep.subr.mxu0 0.0
    %212 = vmatpush2.xpose.msra.mxu0 0.0
    %213 = vmatprep.subr.mxu0 0.0
    %214 = vmatpush2.xpose.msra.mxu0 0.0
    %215 = vmatprep.subr.mxu0 0.0
    %216 = vmatpush2.xpose.msra.mxu0 0.0
    %217 = vmatprep.subr.mxu0 0.0
    %218 = vmatpush2.xpose.msra.mxu0 0.0
    %219 = vmatprep.subr.mxu0 0.0
    %220 = vmatpush2.xpose.msra.mxu0 0.0
    %221 = vmatprep.subr.mxu0 0.0
    %222 = vmatpush2.xpose.msra.mxu0 0.0
    %223 = vmatprep.subr.mxu0 0.0
    %224 = vmatpush2.xpose.msra.mxu0 0.0
    %225 = vmatprep.subr.mxu0 0.0
    %226 = vmatpush2.xpose.msra.mxu0 0.0
    %227 = vmatprep.subr.mxu0 0.0
    %228 = vmatpush2.xpose.msra.mxu0 0.0
    %229 = vmatprep.subr.mxu0 0.0
    %230 = vmatpush2.xpose.msra.mxu0 0.0
    %231 = vmatprep.subr.mxu0 0.0
    %232 = vmatpush2.xpose.msra.mxu0 0.0
    %233 = vmatprep.subr.mxu0 0.0
    %234 = vmatpush2.xpose.msra.mxu0 0.0
    %235 = vmatprep.mubr.f32.mxu0 0.0
    %236 = vmatmul.mubr.f32.gmra.mxu0 %v166
    %v237 = vpop.f32.mrf.mxu0
    %v238 = vadd.f32 0.0, %v237
    %v239 = vpop.f32.mrf.mxu0
    %240 = vdwg.mxu0
    %s241 = smul.u32 0, 8
    %v242 = vlaneseq
    %v243 = vand.u32 %v242, 127
    %v244 = vstv %s241
    %v245 = vadd.s32 %v244, %v243
    %v246 = vld [vmem:[#allocation5] sm:$0xff]
    %247 = vset.pattern.permute.xlu0 0
    %248 = vperm.xlu0 %247, %v246
    %v249 = vpop.permute.xlu0 %248
    %vm250 = vcmp.lt.s32.totalorder %v245, %v249
    %v251 = vsel %vm250, %v162, -inf
    %v252 = vsel %vm250, %v238, -inf
    %v253 = vld [vmem:[#allocation2] sm:$0xff]
    %v254 = vld [vmem:[#allocation2 + $0x8] sm:$0xff]
    %vm255 = vcmask 64512
    %v256 = vsel %vm255, %v251, -inf
    %257 = vmax.xlane.f32.xlu0 %v256
    %v258 = vpop.xlane.xlu0 %257
    %v259 = vsel %vm255, %v252, -inf
    %260 = vmax.xlane.f32.xlu0 %v259
    %v261 = vpop.xlane.xlu0 %260
    %v262 = vmax.f32 %v253, %v258
    %v263 = vmax.f32 %v254, %v261
    %v264 = vsub.f32 %v253, %v262
    %v265 = vsub.f32 %v254, %v263
    %v266 = vmul.f32 %v264, 1.442695
    %v267 = vpow.pop %v266
    %v268 = vmul.f32 %v265, 1.442695
    %v269 = vpow.pop %v268
    %271 = vset.pattern.permute.xlu0 0
    %272 = vperm.xlu0 %271, %v262
    %v273 = vpop.permute.xlu0 %272
    %276 = vset.pattern.permute.xlu0 0
    %277 = vperm.xlu0 %276, %v263
    %v278 = vpop.permute.xlu0 %277
    %v280 = vsub.f32 %v251, %v273
    %v281 = vsub.f32 %v252, %v278
    %v282 = vmul.f32 %v280, 1.442695
    %v283 = vpow.pop %v282
    %v284 = vmul.f32 %v281, 1.442695
    %v285 = vpow.pop %v284
    %v286 = vld [vmem:[#allocation3] sm:$0xff]
    %v287 = vld [vmem:[#allocation3 + $0x8] sm:$0xff]
    %v288 = vmul.f32 %v267, %v286
    %v289 = vmul.f32 %v269, %v287
    %v290 = vsel %vm255, %v283, 0.0
    %291 = vadd.xlane.f32.xlu0 %v290
    %v292 = vpop.xlane.xlu0 %291
    %v293 = vsel %vm255, %v285, 0.0
    %294 = vadd.xlane.f32.xlu0 %v293
    %v295 = vpop.xlane.xlu0 %294
    %v296 = vadd.f32 %v288, %v292
    %v297 = vadd.f32 %v289, %v295
    %vm298 = vcmask 7168
    %299 = vst.msk [vmem:[#allocation3] sm:$0xff] %vm298, %v296
    %300 = vst.msk [vmem:[#allocation3 + $0x8] sm:$0xff] %vm298, %v297
    %v301 = vld [vmem:[#allocation11] sm:$0xff]
    %v302 = vld [vmem:[#allocation11 + $0x8] sm:$0xff]
    %v304 = vsel %vm255, %v283, 0
    %306 = vmatprep.subr.mxu0 0.0
    %307 = vmatpush1.msra.mxu0 0.0
    %308 = vmatprep.subr.mxu0 0.0
    %309 = vmatpush1.msra.mxu0 0.0
    %310 = vmatprep.subr.mxu0 0.0
    %311 = vmatpush1.msra.mxu0 0.0
    %312 = vmatprep.subr.mxu0 0.0
    %313 = vmatpush1.msra.mxu0 0.0
    %314 = vmatprep.subr.mxu0 0.0
    %315 = vmatpush1.msra.mxu0 0.0
    %316 = vmatprep.subr.mxu0 0.0
    %317 = vmatpush1.msra.mxu0 0.0
    %318 = vmatprep.subr.mxu0 0.0
    %319 = vmatpush1.msra.mxu0 0.0
    %320 = vmatprep.subr.mxu0 0.0
    %321 = vmatpush1.msra.mxu0 0.0
    %322 = vmatprep.subr.mxu0 0.0
    %323 = vmatpush1.msra.mxu0 0.0
    %324 = vmatprep.subr.mxu0 0.0
    %325 = vmatpush1.msra.mxu0 0.0
    %326 = vmatprep.subr.mxu0 0.0
    %327 = vmatpush1.msra.mxu0 0.0
    %328 = vmatprep.subr.mxu0 0.0
    %329 = vmatpush1.msra.mxu0 0.0
    %330 = vmatprep.subr.mxu0 0.0
    %331 = vmatpush1.msra.mxu0 0.0
    %332 = vmatprep.subr.mxu0 0.0
    %333 = vmatpush1.msra.mxu0 0.0
    %334 = vmatprep.subr.mxu0 0.0
    %335 = vmatpush1.msra.mxu0 0.0
    %336 = vmatprep.subr.mxu0 0.0
    %337 = vmatpush1.msra.mxu0 %v301
    %338 = vmatprep.subr.mxu0 0.0
    %339 = vmatpush2.msra.mxu0 0.0
    %340 = vmatprep.subr.mxu0 0.0
    %341 = vmatpush2.msra.mxu0 0.0
    %342 = vmatprep.subr.mxu0 0.0
    %343 = vmatpush2.msra.mxu0 0.0
    %344 = vmatprep.subr.mxu0 0.0
    %345 = vmatpush2.msra.mxu0 0.0
    %346 = vmatprep.subr.mxu0 0.0
    %347 = vmatpush2.msra.mxu0 0.0
    %348 = vmatprep.subr.mxu0 0.0
    %349 = vmatpush2.msra.mxu0 0.0
    %350 = vmatprep.subr.mxu0 0.0
    %351 = vmatpush2.msra.mxu0 0.0
    %352 = vmatprep.subr.mxu0 0.0
    %353 = vmatpush2.msra.mxu0 0.0
    %354 = vmatprep.subr.mxu0 0.0
    %355 = vmatpush2.msra.mxu0 0.0
    %356 = vmatprep.subr.mxu0 0.0
    %357 = vmatpush2.msra.mxu0 0.0
    %358 = vmatprep.subr.mxu0 0.0
    %359 = vmatpush2.msra.mxu0 0.0
    %360 = vmatprep.subr.mxu0 0.0
    %361 = vmatpush2.msra.mxu0 0.0
    %362 = vmatprep.subr.mxu0 0.0
    %363 = vmatpush2.msra.mxu0 0.0
    %364 = vmatprep.subr.mxu0 0.0
    %365 = vmatpush2.msra.mxu0 0.0
    %366 = vmatprep.subr.mxu0 0.0
    %367 = vmatpush2.msra.mxu0 0.0
    %368 = vmatprep.subr.mxu0 0.0
    %369 = vmatpush2.msra.mxu0 0.0
    %370 = vmatprep.mubr.f32.mxu0 0.0
    %371 = vmatmul.mubr.f32.gmra.mxu0 %v304
    %v372 = vpop.f32.mrf.mxu0
    %v373 = vadd.f32 0.0, %v372
    %v374 = vpop.f32.mrf.mxu0
    %375 = vdwg.mxu0
    %v377 = vsel %vm255, %v285, 0
    %379 = vmatprep.subr.mxu0 0.0
    %380 = vmatpush1.msra.mxu0 0.0
    %381 = vmatprep.subr.mxu0 0.0
    %382 = vmatpush1.msra.mxu0 0.0
    %383 = vmatprep.subr.mxu0 0.0
    %384 = vmatpush1.msra.mxu0 0.0
    %385 = vmatprep.subr.mxu0 0.0
    %386 = vmatpush1.msra.mxu0 0.0
    %387 = vmatprep.subr.mxu0 0.0
    %388 = vmatpush1.msra.mxu0 0.0
    %389 = vmatprep.subr.mxu0 0.0
    %390 = vmatpush1.msra.mxu0 0.0
    %391 = vmatprep.subr.mxu0 0.0
    %392 = vmatpush1.msra.mxu0 0.0
    %393 = vmatprep.subr.mxu0 0.0
    %394 = vmatpush1.msra.mxu0 0.0
    %395 = vmatprep.subr.mxu0 0.0
    %396 = vmatpush1.msra.mxu0 0.0
    %397 = vmatprep.subr.mxu0 0.0
    %398 = vmatpush1.msra.mxu0 0.0
    %399 = vmatprep.subr.mxu0 0.0
    %400 = vmatpush1.msra.mxu0 0.0
    %401 = vmatprep.subr.mxu0 0.0
    %402 = vmatpush1.msra.mxu0 0.0
    %403 = vmatprep.subr.mxu0 0.0
    %404 = vmatpush1.msra.mxu0 0.0
    %405 = vmatprep.subr.mxu0 0.0
    %406 = vmatpush1.msra.mxu0 0.0
    %407 = vmatprep.subr.mxu0 0.0
    %408 = vmatpush1.msra.mxu0 0.0
    %409 = vmatprep.subr.mxu0 0.0
    %410 = vmatpush1.msra.mxu0 %v302
    %411 = vmatprep.subr.mxu0 0.0
    %412 = vmatpush2.msra.mxu0 0.0
    %413 = vmatprep.subr.mxu0 0.0
    %414 = vmatpush2.msra.mxu0 0.0
    %415 = vmatprep.subr.mxu0 0.0
    %416 = vmatpush2.msra.mxu0 0.0
    %417 = vmatprep.subr.mxu0 0.0
    %418 = vmatpush2.msra.mxu0 0.0
    %419 = vmatprep.subr.mxu0 0.0
    %420 = vmatpush2.msra.mxu0 0.0
    %421 = vmatprep.subr.mxu0 0.0
    %422 = vmatpush2.msra.mxu0 0.0
    %423 = vmatprep.subr.mxu0 0.0
    %424 = vmatpush2.msra.mxu0 0.0
    %425 = vmatprep.subr.mxu0 0.0
    %426 = vmatpush2.msra.mxu0 0.0
    %427 = vmatprep.subr.mxu0 0.0
    %428 = vmatpush2.msra.mxu0 0.0
    %429 = vmatprep.subr.mxu0 0.0
    %430 = vmatpush2.msra.mxu0 0.0
    %431 = vmatprep.subr.mxu0 0.0
    %432 = vmatpush2.msra.mxu0 0.0
    %433 = vmatprep.subr.mxu0 0.0
    %434 = vmatpush2.msra.mxu0 0.0
    %435 = vmatprep.subr.mxu0 0.0
    %436 = vmatpush2.msra.mxu0 0.0
    %437 = vmatprep.subr.mxu0 0.0
    %438 = vmatpush2.msra.mxu0 0.0
    %439 = vmatprep.subr.mxu0 0.0
    %440 = vmatpush2.msra.mxu0 0.0
    %441 = vmatprep.subr.mxu0 0.0
    %442 = vmatpush2.msra.mxu0 0.0
    %443 = vmatprep.mubr.f32.mxu0 0.0
    %444 = vmatmul.mubr.f32.gmra.mxu0 %v377
    %v445 = vpop.f32.mrf.mxu0
    %v446 = vadd.f32 0.0, %v445
    %v447 = vpop.f32.mrf.mxu0
    %448 = vdwg.mxu0
    %v449 = vld [vmem:[#allocation4] sm:$0xff]
    %v450 = vld [vmem:[#allocation4 + $0x8] sm:$0xff]
    %452 = vset.pattern.permute.xlu0 0
    %453 = vperm.xlu0 %452, %v267
    %v454 = vpop.permute.xlu0 %453
    %457 = vset.pattern.permute.xlu0 0
    %458 = vperm.xlu0 %457, %v269
    %v459 = vpop.permute.xlu0 %458
    %v461 = vmul.f32 %v454, %v449
    %v462 = vmul.f32 %v459, %v450
    %v463 = vadd.f32 %v461, %v373
    %v464 = vadd.f32 %v462, %v446
    %465 = vst [vmem:[#allocation4] sm:$0xff] %v463
    %466 = vst [vmem:[#allocation4 + $0x8] sm:$0xff] %v464
    %467 = vst.msk [vmem:[#allocation2] sm:$0xff] %vm298, %v262
    %468 = vst.msk [vmem:[#allocation2 + $0x8] sm:$0xff] %vm298, %v263
    // Predicated region
    $region38: #{tpu_custom_call.1} parent=1 // pred_check
      %p469 = pneg %p71
    $region39: #{tpu_custom_call.1} parent=1 // pred_check_branch
      %471 = sbr.rel (%p469) target = $region41
    $region40: #{tpu_custom_call.1} parent=1 // pred_region
      %v472 = vld [vmem:[#allocation3] sm:$0xff]
      %v473 = vld [vmem:[#allocation3 + $0x8] sm:$0xff]
      %v474 = vrcp.pop %v472
      %v475 = vrcp.pop %v473
      %v476 = vld [vmem:[#allocation4] sm:$0xff]
      %v477 = vld [vmem:[#allocation4 + $0x8] sm:$0xff]
      %479 = vset.pattern.permute.xlu0 0
      %480 = vperm.xlu0 %479, %v474
      %v481 = vpop.permute.xlu0 %480
      %484 = vset.pattern.permute.xlu0 0
      %485 = vperm.xlu0 %484, %v475
      %v486 = vpop.permute.xlu0 %485
      %v488 = vmul.f32 %v476, %v481
      %v489 = vmul.f32 %v477, %v486
      %490 = vst [vmem:[#allocation13] sm:$0xff] %v488
      %491 = vst [vmem:[#allocation13 + $0x8] sm:$0xff] %v489
    $region41: #{tpu_custom_call.1} parent=1 // pred_fallthru
      _
    // Predicated region
    $region42: #{tpu_custom_call.1} parent=1 // pred_check
      _
    $region43: #{tpu_custom_call.1} parent=1 // pred_check_branch
      %493 = sbr.rel (0) target = $region45
    $region44: #{tpu_custom_call.1} parent=1 // pred_region
      %s495 = ssub.s32 256, 256
      %496 = vsyncadd [#allocation7], %s495
      %s497 = sshll.u32 [#allocation13], 4
      %s498 = int_to_ptr.vmem [resolvable:$true] %s497
      %503 = dma.vmem_to_hbm [thread:$0]  %s498, 256, %s4, [#allocation7], 128, 128, 8
    $region45: #{tpu_custom_call.1} parent=1 // pred_fallthru
      _
    // Predicated region
    $region46: #{tpu_custom_call.1} parent=1 // pred_check
      _
    $region47: #{tpu_custom_call.1} parent=1 // pred_check_branch
      %505 = sbr.rel (0) target = $region49
    $region48: #{tpu_custom_call.1} parent=1 // pred_region
      %506 = dma.done [#allocation7], 256
    $region49: #{tpu_custom_call.1} parent=1 // pred_fallthru
      _
    %507 = vsyncpa [#allocation6], 1
    %508 = vsyncpa [#allocation9], 1
    %509 = vsyncpa [#allocation12], 1
    %510 = vsyncpa [#allocation7], 1

</llo_original>
